<compile_context>
chip_gen: v5e
topology: v5e:2x2
jax: 0.10.0
libtpu: 0.0.40
codegen_flags: <defaults>
</compile_context>

<pallas_src>
import math

import jax
import jax.numpy as jnp
from jax.experimental import pallas as pl
from jax.experimental.pallas import tpu as pltpu


# --------------------- prompt-derived K / V^T (per prompt) ------------------ #
def _prepare_kv_kernel(pe_ref, pet_ref, wk_ref, wvt_ref, k_out, vt_out):
    """Cross-attention K (pre-scaled by 1/sqrt(F)) and V^T of prompt_embeds.

    prompt_embeds never change across scheduler steps, so these matmuls (and
    the attention scale) are hoisted out of the per-step kernel.
    """
    f32 = jnp.float32
    f_dim = wk_ref.shape[1]
    scale = 1.0 / math.sqrt(float(f_dim))
    for b in range(2):                                    # CFG branches (static)
        k_out[b] = (jnp.dot(pe_ref[b], wk_ref[...],
                            preferred_element_type=f32) * scale).astype(k_out.dtype)
        vt_out[b] = jnp.dot(wvt_ref[...], pet_ref[b],
                            preferred_element_type=f32).astype(vt_out.dtype)


def precompute_prompt_kv(params, prompt_embeds):
    pe = prompt_embeds.astype(jnp.bfloat16)               # [2, S, D]
    pet = jnp.swapaxes(pe, 1, 2)                          # [2, D, S]
    S = pe.shape[1]
    F = params["wq_t"].shape[0]
    vmem = pl.BlockSpec(memory_space=pltpu.MemorySpace.VMEM)
    k, vt = pl.pallas_call(
        _prepare_kv_kernel,
        out_shape=(jax.ShapeDtypeStruct((2, S, F), jnp.bfloat16),
                   jax.ShapeDtypeStruct((2, F, S), jnp.bfloat16)),
        in_specs=[vmem, vmem, vmem, vmem],
        out_specs=(vmem, vmem),
    )(pe, pet, params["wk"], params["wv_t"])
    return k, vt


# --------------------------- per-step main kernel --------------------------- #
def _scheduled_unet_kernel(
    scal_ref,       # SMEM f32[4]: sigma, sigma_next, guidance_scale, pad
    sample_ref,     # VMEM f32  [C, HW_TILE]  original sample (channels-first flat)
    cond_ref,       # VMEM bf16 [KC, 2]       fused [temb | text_embeds | time_ids]
    k_ref,          # VMEM bf16 [2, S, F]     precomputed K*1/sqrt(F) per CFG branch
    vt_ref,         # VMEM bf16 [2, F, S]     precomputed V^T per CFG branch
    w_cond_ref,     # VMEM bf16 [F, KC]       fused time/add-embedding weight
    b_cond_ref,     # VMEM f32  [F, 1]
    w_in_ref,       # VMEM bf16 [F, C]        conv_in (1x1)
    b_in_ref,       # VMEM f32  [F, 1]
    wq_ref,         # VMEM bf16 [F, F]        attention q projection
    wo_ref,         # VMEM bf16 [F, F]        attention out projection
    w_out_ref,      # VMEM bf16 [C, F]        conv_out (1x1)
    b_out_ref,      # VMEM f32  [C, 1]
    out_ref,        # VMEM f32  [C, HW_TILE]  new sample
):
    f32, bf16 = jnp.float32, jnp.bfloat16
    sigma, sigma_next, g = scal_ref[0], scal_ref[1], scal_ref[2]

    hw = sample_ref.shape[1]

    # scheduler.scale_model_input (EulerDiscrete): x / sqrt(sigma^2 + 1)
    inv_scale = jax.lax.rsqrt(sigma * sigma + 1.0)
    x = (sample_ref[...] * inv_scale).astype(bf16)                          # [C, hw]

    # conv_in (1x1).  latent_model_input = cat([sample]*2): both CFG branches
    # see the identical latent, so this matmul is shared (done once).
    h0 = jnp.dot(w_in_ref[...], x, preferred_element_type=f32) + b_in_ref[...]   # [F, hw]

    # Fused time embedding + added-cond embedding: one [F,KC]x[KC,2] matmul
    # covers both branches (branch-specific text_embeds/time_ids live in cond).
    emb = jnp.dot(w_cond_ref[...], cond_ref[...],
                  preferred_element_type=f32) + b_cond_ref[...]             # [F, 2]
    emb = jax.nn.silu(emb)

    # Per-branch hidden states packed wide along the lane axis (residual path).
    h_wide = jnp.concatenate([h0 + emb[:, 0:1], h0 + emb[:, 1:2]], axis=1)  # [F, 2*hw]

    # q projection: q_b = Wq@(h0 + emb_b) = Wq@h0 + Wq@emb_b, so project the
    # shared activation once and add the tiny [F,2] embedding projection.
    q0 = jnp.dot(wq_ref[...], h0.astype(bf16), preferred_element_type=f32)      # [F, hw]
    q_emb = jnp.dot(wq_ref[...], emb.astype(bf16), preferred_element_type=f32)  # [F, 2]

    # Cross-attention with prompt_embeds (K / V^T differ per branch).
    # K already carries the 1/sqrt(F) scale; scores are lane-dense [S, hw].
    ctx = []
    for b in range(2):                                                      # static unroll
        q_b = (q0 + q_emb[:, b:b + 1]).astype(bf16)                         # [F, hw]
        s_b = jnp.dot(k_ref[b], q_b, preferred_element_type=f32)            # [S, hw]
        m = jnp.max(s_b, axis=0, keepdims=True)                             # [1, hw]
        e = jnp.exp(s_b - m)
        attn = (e * pl.reciprocal(jnp.sum(e, axis=0, keepdims=True),
                                  approx=True)).astype(bf16)                # [S, hw]
        ctx.append(jnp.dot(vt_ref[b], attn, preferred_element_type=f32))    # [F, hw]
    ctx_wide = jnp.concatenate(ctx, axis=1)                                 # [F, 2*hw]

    # Attention output projection + conv_out: one wide matmul each (N = 2*hw).
    o_wide = jnp.dot(wo_ref[...], ctx_wide.astype(bf16), preferred_element_type=f32)
    h2 = jax.nn.silu(h_wide + o_wide)
    pred = jnp.dot(w_out_ref[...], h2.astype(bf16),
                   preferred_element_type=f32) + b_out_ref[...]             # [C, 2*hw]

    # classifier-free guidance
    noise_uncond = pred[:, :hw]
    noise_text = pred[:, hw:]
    noise = noise_uncond + g * (noise_text - noise_uncond)

    # scheduler.step (Euler discrete): prev_sample = sample + noise*(sigma_next - sigma)
    out_ref[...] = sample_ref[...] + noise * (sigma_next - sigma)


# ------------------------------ JAX wrapper -------------------------------- #
def make_params(key, C=4, F=32, S=8, D=32, DT=32, E=32, KC=128):
    """Surrogate UNet weights, stored directly in kernel ([out, in]) layout, bf16."""
    ks = jax.random.split(key, 7)
    nrm = lambda k, shape, fan: (jax.random.normal(k, shape, jnp.float32)
                                 / math.sqrt(float(fan)))
    k_used = E + DT + 6
    w_cond = nrm(ks[0], (F, k_used), k_used)
    w_cond_t = jnp.pad(w_cond, ((0, 0), (0, KC - k_used))).astype(jnp.bfloat16)
    return dict(
        cond_dims=(E, DT),
        w_cond_t=w_cond_t,                                  # [F, KC] fused emb weight
        b_cond=jnp.zeros((F, 1), jnp.float32),
        w_in_t=nrm(ks[1], (F, C), C).astype(jnp.bfloat16),  # conv_in
        b_in=jnp.zeros((F, 1), jnp.float32),
        wq_t=nrm(ks[2], (F, F), F).astype(jnp.bfloat16),
        wk=nrm(ks[3], (D, F), D).astype(jnp.bfloat16),      # [D, F]
        wv_t=nrm(ks[4], (F, D), D).astype(jnp.bfloat16),    # [F, D]
        wo_t=nrm(ks[5], (F, F), F).astype(jnp.bfloat16),
        w_out_t=nrm(ks[6], (C, F), F).astype(jnp.bfloat16), # conv_out
        b_out=jnp.zeros((C, 1), jnp.float32),
    )


def make_scheduler(num_inference_steps=4):
    """Deterministic Euler-discrete-style schedule (synthetic sigmas)."""
    timesteps = jnp.linspace(999.0, 0.0, num_inference_steps, dtype=jnp.float32)
    sigmas = jnp.concatenate(
        [jnp.linspace(14.6, 0.5, num_inference_steps, dtype=jnp.float32),
         jnp.zeros((1,), jnp.float32)])
    return timesteps, sigmas


def _timestep_embedding(t, dim):
    half = dim // 2
    freqs = jnp.exp(-math.log(10000.0) * jnp.arange(half, dtype=jnp.float32) / half)
    args = t * freqs
    return jnp.concatenate([jnp.cos(args), jnp.sin(args)])[None, :]         # [1, dim]


def sdxl_scheduled_unet_forward(params, timesteps, sigmas,
                                sample, prompt_kv, text_embeds, time_ids,
                                guidance_scale, step_index):
    """sample: [1, C, H, W] (NCHW). Returns the new sample, same shape (f32)."""
    _, C, H, W = sample.shape
    HW = H * W
    E, DT = params["cond_dims"]
    KC = params["w_cond_t"].shape[1]
    k, vt = prompt_kv

    # NCHW -> channels-first flat [C, HW]: a pure reshape (no transpose); the
    # kernel's [C, HW] output reshapes straight back to NCHW.
    sample_flat = sample.reshape(C, HW).astype(jnp.float32)

    t = timesteps[step_index]
    sigma = sigmas[step_index]
    sigma_next = sigmas[step_index + 1]

    # Fused conditioning per CFG branch: [temb | text_embeds | time_ids],
    # zero-padded to KC, laid out as columns [KC, 2] (temb is branch-invariant).
    temb = _timestep_embedding(t, E)                                        # [1, E]
    cond = jnp.concatenate(
        [jnp.broadcast_to(temb, (2, E)),
         text_embeds.astype(jnp.float32),
         time_ids.astype(jnp.float32)], axis=1)                             # [2, E+DT+6]
    cond = jnp.pad(cond, ((0, 0), (0, KC - cond.shape[1])))
    cond_t = cond.T.astype(jnp.bfloat16)                                    # [KC, 2]

    scalars = jnp.stack([sigma, sigma_next,
                         jnp.float32(guidance_scale), jnp.float32(0.0)])

    # Largest multiple-of-128 tile up to 512 lanes (fewer grid steps,
    # unmasked lane-dense stores); fall back to full HW if not 128-aligned.
    if HW % 128 == 0:
        tile_hw = min(HW, 512)
        while HW % tile_hw:
            tile_hw -= 128
    else:
        tile_hw = HW
    grid = (HW // tile_hw,)

    smem = pl.BlockSpec(memory_space=pltpu.MemorySpace.SMEM)
    vmem = pl.BlockSpec(memory_space=pltpu.MemorySpace.VMEM)
    samp_spec = pl.BlockSpec((C, tile_hw), lambda i: (0, i))

    out_flat = pl.pallas_call(
        _scheduled_unet_kernel,
        out_shape=jax.ShapeDtypeStruct((C, HW), jnp.float32),
        grid=grid,
        in_specs=[smem, samp_spec] + [vmem] * 11,
        out_specs=pl.BlockSpec((C, tile_hw), lambda i: (0, i)),
        input_output_aliases={1: 0},          # sample -> out (same shape/dtype)
        compiler_params=pltpu.CompilerParams(
            dimension_semantics=("parallel",)),  # HW tiles are independent
    )(scalars, sample_flat, cond_t, k, vt,
      params["w_cond_t"], params["b_cond"],
      params["w_in_t"], params["b_in"],
      params["wq_t"], params["wo_t"],
      params["w_out_t"], params["b_out"])

    return out_flat.reshape(1, C, H, W)


# --------------------------------- main ------------------------------------ #
if __name__ == "__main__":
    # Small shapes consistent with the module's forward:
    #   sample:        [1, 4, 16, 16]   (latent NCHW, batch 1)
    #   prompt_embeds: [2, 8, 32]       (CFG-doubled encoder hidden states)
    #   text_embeds:   [2, 32]          added_cond_kwargs
    #   time_ids:      [2, 6]           added_cond_kwargs
    C, H, W, S, D, DT, E, F = 4, 16, 16, 8, 32, 32, 32, 32

    key = jax.random.PRNGKey(0)
    k_p, k_s, k_pe, k_te = jax.random.split(key, 4)

    params = make_params(k_p, C=C, F=F, S=S, D=D, DT=DT, E=E)
    timesteps, sigmas = make_scheduler(num_inference_steps=4)

    sample = jax.random.normal(k_s, (1, C, H, W), jnp.float32)
    prompt_embeds = jax.random.normal(k_pe, (2, S, D), jnp.float32)
    text_embeds = jax.random.normal(k_te, (2, DT), jnp.float32)

    # add_time_ids = [orig_h, orig_w, crop_top, crop_left, target_h, target_w]
    time_ids = jnp.tile(
        jnp.array([[H * 8, W * 8, 0, 0, H * 8, W * 8]], jnp.float32), (2, 1))

    guidance_scale = 7.5
    step_index = 0

    # Prompt-derived K / V^T: computed once, reused for every scheduler step.
    prompt_kv = precompute_prompt_kv(params, prompt_embeds)

    out = sdxl_scheduled_unet_forward(
        params, timesteps, sigmas,
        sample, prompt_kv, text_embeds, time_ids,
        guidance_scale, step_index)

    out = jax.block_until_ready(out)
    assert out.shape == (1, C, H, W) and out.dtype == jnp.float32
    assert bool(jnp.all(jnp.isfinite(out)))
    print("KERNEL_OK")
</pallas_src>

<mosaic_0001>
module attributes {stable_mosaic.version = 11 : i64} {
  func.func @_prepare_kv_kernel(%arg0: memref<2x8x32xbf16, #tpu.memory_space<vmem>>, %arg1: memref<2x32x8xbf16, #tpu.memory_space<vmem>>, %arg2: memref<32x32xbf16, #tpu.memory_space<vmem>>, %arg3: memref<32x32xbf16, #tpu.memory_space<vmem>>, %arg4: memref<2x8x32xbf16, #tpu.memory_space<vmem>>, %arg5: memref<2x32x8xbf16, #tpu.memory_space<vmem>>) attributes {dimension_semantics = [], scalar_prefetch = 0 : i64, scratch_operands = 0 : i64, tpu.core_type = #tpu.core_type<tc>} {
    %c0 = arith.constant 0 : index
    %c0_0 = arith.constant 0 : index
    %c0_1 = arith.constant 0 : index
    %0 = vector.load %arg0[%c0, %c0_0, %c0_1] : memref<2x8x32xbf16, #tpu.memory_space<vmem>>, vector<1x8x32xbf16>
    %1 = vector.shape_cast %0 : vector<1x8x32xbf16> to vector<8x32xbf16>
    %c0_2 = arith.constant 0 : index
    %c0_3 = arith.constant 0 : index
    %2 = vector.load %arg2[%c0_2, %c0_3] : memref<32x32xbf16, #tpu.memory_space<vmem>>, vector<32x32xbf16>
    %cst = arith.constant dense<0.000000e+00> : vector<8x32xf32>
    %3 = tpu.matmul %1, %2, %cst {dimension_numbers = #tpu.dot_dimension_numbers<[1], [0], [0], [1], [0, 0, 1, 1], [], []>} : vector<8x32xbf16>, vector<32x32xbf16>, vector<8x32xf32> -> vector<8x32xf32>
    %cst_4 = arith.constant 0.176776692 : f32
    %4 = vector.broadcast %cst_4 : f32 to vector<8x32xf32>
    %5 = arith.mulf %3, %4 : vector<8x32xf32>
    %6 = arith.truncf %5 : vector<8x32xf32> to vector<8x32xbf16>
    %c0_5 = arith.constant 0 : index
    %c0_6 = arith.constant 0 : index
    %c0_7 = arith.constant 0 : index
    %7 = vector.load %arg4[%c0_5, %c0_6, %c0_7] : memref<2x8x32xbf16, #tpu.memory_space<vmem>>, vector<1x8x32xbf16>
    %8 = vector.shape_cast %7 : vector<1x8x32xbf16> to vector<8x32xbf16>
    %9 = vector.shape_cast %6 : vector<8x32xbf16> to vector<1x8x32xbf16>
    tpu.vector_store %arg4[%c0_5, %c0_6, %c0_7], %9 {strides = array<i32>} : memref<2x8x32xbf16, #tpu.memory_space<vmem>>, vector<1x8x32xbf16>,
    %c0_8 = arith.constant 0 : index
    %c0_9 = arith.constant 0 : index
    %10 = vector.load %arg3[%c0_8, %c0_9] : memref<32x32xbf16, #tpu.memory_space<vmem>>, vector<32x32xbf16>
    %c0_10 = arith.constant 0 : index
    %c0_11 = arith.constant 0 : index
    %c0_12 = arith.constant 0 : index
    %11 = vector.load %arg1[%c0_10, %c0_11, %c0_12] : memref<2x32x8xbf16, #tpu.memory_space<vmem>>, vector<1x32x8xbf16>
    %12 = vector.shape_cast %11 : vector<1x32x8xbf16> to vector<32x8xbf16>
    %cst_13 = arith.constant dense<0.000000e+00> : vector<32x8xf32>
    %13 = tpu.matmul %10, %12, %cst_13 {dimension_numbers = #tpu.dot_dimension_numbers<[1], [0], [0], [1], [0, 0, 1, 1], [], []>} : vector<32x32xbf16>, vector<32x8xbf16>, vector<32x8xf32> -> vector<32x8xf32>
    %14 = arith.truncf %13 : vector<32x8xf32> to vector<32x8xbf16>
    %c0_14 = arith.constant 0 : index
    %c0_15 = arith.constant 0 : index
    %c0_16 = arith.constant 0 : index
    %15 = vector.load %arg5[%c0_14, %c0_15, %c0_16] : memref<2x32x8xbf16, #tpu.memory_space<vmem>>, vector<1x32x8xbf16>
    %16 = vector.shape_cast %15 : vector<1x32x8xbf16> to vector<32x8xbf16>
    %17 = vector.shape_cast %14 : vector<32x8xbf16> to vector<1x32x8xbf16>
    tpu.vector_store %arg5[%c0_14, %c0_15, %c0_16], %17 {strides = array<i32>} : memref<2x32x8xbf16, #tpu.memory_space<vmem>>, vector<1x32x8xbf16>,
    %c1 = arith.constant 1 : index
    %c0_17 = arith.constant 0 : index
    %c0_18 = arith.constant 0 : index
    %18 = vector.load %arg0[%c1, %c0_17, %c0_18] : memref<2x8x32xbf16, #tpu.memory_space<vmem>>, vector<1x8x32xbf16>
    %19 = vector.shape_cast %18 : vector<1x8x32xbf16> to vector<8x32xbf16>
    %c0_19 = arith.constant 0 : index
    %c0_20 = arith.constant 0 : index
    %20 = vector.load %arg2[%c0_19, %c0_20] : memref<32x32xbf16, #tpu.memory_space<vmem>>, vector<32x32xbf16>
    %cst_21 = arith.constant dense<0.000000e+00> : vector<8x32xf32>
    %21 = tpu.matmul %19, %20, %cst_21 {dimension_numbers = #tpu.dot_dimension_numbers<[1], [0], [0], [1], [0, 0, 1, 1], [], []>} : vector<8x32xbf16>, vector<32x32xbf16>, vector<8x32xf32> -> vector<8x32xf32>
    %cst_22 = arith.constant 0.176776692 : f32
    %22 = vector.broadcast %cst_22 : f32 to vector<8x32xf32>
    %23 = arith.mulf %21, %22 : vector<8x32xf32>
    %24 = arith.truncf %23 : vector<8x32xf32> to vector<8x32xbf16>
    %c1_23 = arith.constant 1 : index
    %c0_24 = arith.constant 0 : index
    %c0_25 = arith.constant 0 : index
    %25 = vector.load %arg4[%c1_23, %c0_24, %c0_25] : memref<2x8x32xbf16, #tpu.memory_space<vmem>>, vector<1x8x32xbf16>
    %26 = vector.shape_cast %25 : vector<1x8x32xbf16> to vector<8x32xbf16>
    %27 = vector.shape_cast %24 : vector<8x32xbf16> to vector<1x8x32xbf16>
    tpu.vector_store %arg4[%c1_23, %c0_24, %c0_25], %27 {strides = array<i32>} : memref<2x8x32xbf16, #tpu.memory_space<vmem>>, vector<1x8x32xbf16>,
    %c0_26 = arith.constant 0 : index
    %c0_27 = arith.constant 0 : index
    %28 = vector.load %arg3[%c0_26, %c0_27] : memref<32x32xbf16, #tpu.memory_space<vmem>>, vector<32x32xbf16>
    %c1_28 = arith.constant 1 : index
    %c0_29 = arith.constant 0 : index
    %c0_30 = arith.constant 0 : index
    %29 = vector.load %arg1[%c1_28, %c0_29, %c0_30] : memref<2x32x8xbf16, #tpu.memory_space<vmem>>, vector<1x32x8xbf16>
    %30 = vector.shape_cast %29 : vector<1x32x8xbf16> to vector<32x8xbf16>
    %cst_31 = arith.constant dense<0.000000e+00> : vector<32x8xf32>
    %31 = tpu.matmul %28, %30, %cst_31 {dimension_numbers = #tpu.dot_dimension_numbers<[1], [0], [0], [1], [0, 0, 1, 1], [], []>} : vector<32x32xbf16>, vector<32x8xbf16>, vector<32x8xf32> -> vector<32x8xf32>
    %32 = arith.truncf %31 : vector<32x8xf32> to vector<32x8xbf16>
    %c1_32 = arith.constant 1 : index
    %c0_33 = arith.constant 0 : index
    %c0_34 = arith.constant 0 : index
    %33 = vector.load %arg5[%c1_32, %c0_33, %c0_34] : memref<2x32x8xbf16, #tpu.memory_space<vmem>>, vector<1x32x8xbf16>
    %34 = vector.shape_cast %33 : vector<1x32x8xbf16> to vector<32x8xbf16>
    %35 = vector.shape_cast %32 : vector<32x8xbf16> to vector<1x32x8xbf16>
    tpu.vector_store %arg5[%c1_32, %c0_33, %c0_34], %35 {strides = array<i32>} : memref<2x32x8xbf16, #tpu.memory_space<vmem>>, vector<1x32x8xbf16>,
    return
  }
}

</mosaic_0001>

<llo_original>
// kernel: tpu_custom_call.1
$region0: #{tpu_custom_call.1}
  #allocation0 [shape = 'u32[]', space=smem, size = 0x4, offset = 0x4, fixed_abs, tag = 'smem constant byte address 0x4 - core index']
  #allocation1 [shape = 'u32[72,128]{1,0:T(1,128)}', space=vmem, size = 0x9000, scoped, tag = 'internal scratch']
  %s0 = inlined_call_operand.vmem [shape: bf16[2,8,32], index: 0, kind: input, shape index: {}]
  %s1 = inlined_call_operand.vmem [shape: bf16[2,32,8], index: 1, kind: input, shape index: {}]
  %s2 = inlined_call_operand.vmem [shape: bf16[32,32], index: 2, kind: input, shape index: {}]
  %s3 = inlined_call_operand.vmem [shape: bf16[32,32], index: 3, kind: input, shape index: {}]
  %s4 = inlined_call_operand.hbm [shape: bf16[2,8,32], index: 4, kind: output, shape index: {0}]
  %s5 = inlined_call_operand.vmem [shape: bf16[2,32,8], index: 5, kind: output, shape index: {1}]
  %6 = xla_tuple %s4, %s5
  %s7 = sld [smem:[#allocation0]]
  $region34: #{tpu_custom_call.1} parent=0
    _
  %s9 = ssub.s32 1, %s7
  %s10 = scalar_select 0, %s9, %s7
  $region1: #{tpu_custom_call.1} parent=0
    #allocation2 [shape = 'u8[4096]{0}', space=vmem, size = 0x1000, scoped, tag = 'output window, operand 0, single buffered']
    #allocation3 [shape = 's32[1]{0}', space=sflag, size = 0x4, scoped, tag = 'scoped memory for tpu_custom_call.1']
    %11 = vsyncpa [#allocation3], 0
    // Predicated region
    $region2: #{tpu_custom_call.1} parent=1 // pred_check
      _
    $region3: #{tpu_custom_call.1} parent=1 // pred_check_branch
      %13 = sbr.rel (0) target = $region5
    $region4: #{tpu_custom_call.1} parent=1 // pred_region
      _
    $region5: #{tpu_custom_call.1} parent=1 // pred_fallthru
      _
    // Predicated region
    $region6: #{tpu_custom_call.1} parent=1 // pred_check
      _
    $region7: #{tpu_custom_call.1} parent=1 // pred_check_branch
      %15 = sbr.rel (0) target = $region9
    $region8: #{tpu_custom_call.1} parent=1 // pred_region
      _
    $region9: #{tpu_custom_call.1} parent=1 // pred_fallthru
      _
    // Predicated region
    $region10: #{tpu_custom_call.1} parent=1 // pred_check
      _
    $region11: #{tpu_custom_call.1} parent=1 // pred_check_branch
      %17 = sbr.rel (0) target = $region13
    $region12: #{tpu_custom_call.1} parent=1 // pred_region
      _
    $region13: #{tpu_custom_call.1} parent=1 // pred_fallthru
      _
    // Predicated region
    $region14: #{tpu_custom_call.1} parent=1 // pred_check
      _
    $region15: #{tpu_custom_call.1} parent=1 // pred_check_branch
      %19 = sbr.rel (0) target = $region17
    $region16: #{tpu_custom_call.1} parent=1 // pred_region
      _
    $region17: #{tpu_custom_call.1} parent=1 // pred_fallthru
      _
    %v21 = vld [vmem:[%s0] sm:$0xf]
    %v22 = vld [vmem:[%s2] sm:$0xf]
    %v23 = vld [vmem:[%s2 + $0x4] sm:$0xf]
    %v24 = vld [vmem:[%s2 + $0x8] sm:$0xf]
    %v25 = vld [vmem:[%s2 + $0xc] sm:$0xf]
    %v30 = vunpack.c.l.b16 %v22
    %v31 = vunpack.c.l.b16 %v23
    %v32 = vunpack.c.l.b16 %v24
    %v33 = vunpack.c.l.b16 %v25
    %v34 = vpack.c.b16 %v31, %v30
    %v35 = vpack.c.b16 %v33, %v32
    %vm38 = vcmask 261120
    %v40 = vsel %vm38, %v21, 0
    %42 = vmatpush.bf16.msra.mxu0 0
    %43 = vmatpush.bf16.msra.mxu0 0
    %44 = vmatpush.bf16.msra.mxu0 0
    %45 = vmatpush.bf16.msra.mxu0 0
    %46 = vmatpush.bf16.msra.mxu0 0
    %47 = vmatpush.bf16.msra.mxu0 0
    %48 = vmatpush.bf16.msra.mxu0 %v35
    %49 = vmatpush.bf16.msra.mxu0 %v34
    %50 = vmatmul.bf16.gmra.mxu0 %v40
    %v51 = vpop.f32.mrf.mxu0
    %v52 = vadd.f32 0.0, %v51
    %v53 = vpop.f32.mrf.mxu0
    %54 = vdwg.mxu0
    %v55 = vmul.f32 %v52, 0.17677669
    %v56 = vpack.c.bf16 %v55, %v55
    %vm57 = vcmask 257024
    %58 = vst.msk [vmem:[#allocation2] sm:$0xf] %vm57, %v56
    %v59 = vld [vmem:[%s3] sm:$0xf]
    %v60 = vld [vmem:[%s3 + $0x4] sm:$0xf]
    %v61 = vld [vmem:[%s3 + $0x8] sm:$0xf]
    %v62 = vld [vmem:[%s3 + $0xc] sm:$0xf]
    %v63 = vld [vmem:[%s1] sm:$0xf]
    %v64 = vld [vmem:[%s1 + $0x4] sm:$0xf]
    %v65 = vld [vmem:[%s1 + $0x8] sm:$0xf]
    %v66 = vld [vmem:[%s1 + $0xc] sm:$0xf]
    %v71 = vunpack.c.l.b16 %v59
    %v72 = vunpack.c.l.b16 %v60
    %v73 = vunpack.c.l.b16 %v61
    %v74 = vunpack.c.l.b16 %v62
    %v75 = vpack.c.b16 %v72, %v71
    %v76 = vpack.c.b16 %v74, %v73
    %v81 = vunpack.c.l.b16 %v63
    %v82 = vunpack.c.l.b16 %v64
    %v83 = vunpack.c.l.b16 %v65
    %v84 = vunpack.c.l.b16 %v66
    %v85 = vpack.c.b16 %v82, %v81
    %v86 = vpack.c.b16 %v84, %v83
    %v90 = vsel %vm38, %v75, 0
    %v93 = vsel %vm38, %v76, 0
    %95 = vmatpush.bf16.msra.mxu0 0
    %96 = vmatpush.bf16.msra.mxu0 0
    %97 = vmatpush.bf16.msra.mxu0 0
    %98 = vmatpush.bf16.msra.mxu0 0
    %99 = vmatpush.bf16.msra.mxu0 0
    %100 = vmatpush.bf16.msra.mxu0 0
    %101 = vmatpush.bf16.msra.mxu0 %v86
    %102 = vmatpush.bf16.msra.mxu0 %v85
    %103 = vmatmul.bf16.gmra.mxu0 %v90
    %v104 = vpop.f32.mrf.mxu0
    %v105 = vadd.f32 0.0, %v104
    %v106 = vpop.f32.mrf.mxu0
    %v107 = vadd.f32 0.0, %v106
    %108 = vmatmul.bf16.gmra.mxu0 %v93
    %v109 = vpop.f32.mrf.mxu0
    %v110 = vadd.f32 0.0, %v109
    %v111 = vpop.f32.mrf.mxu0
    %v112 = vadd.f32 0.0, %v111
    %113 = vdwg.mxu0
    %v114 = vpack.c.bf16 %v105, %v105
    %v115 = vpack.c.bf16 %v107, %v107
    %v116 = vpack.c.bf16 %v110, %v110
    %v117 = vpack.c.bf16 %v112, %v112
    %vm118 = vcmask 60416
    %119 = vst.msk [vmem:[%s5] sm:$0xf] %vm118, %v114
    %120 = vst.msk [vmem:[%s5 + $0x4] sm:$0xf] %vm118, %v115
    %121 = vst.msk [vmem:[%s5 + $0x8] sm:$0xf] %vm118, %v116
    %122 = vst.msk [vmem:[%s5 + $0xc] sm:$0xf] %vm118, %v117
    %s123 = scalar_lea.vmem %s0, 4
    %v124 = vld [vmem:[%s123] sm:$0xf]
    %v125 = vld [vmem:[%s2] sm:$0xf]
    %v126 = vld [vmem:[%s2 + $0x4] sm:$0xf]
    %v127 = vld [vmem:[%s2 + $0x8] sm:$0xf]
    %v128 = vld [vmem:[%s2 + $0xc] sm:$0xf]
    %v133 = vunpack.c.l.b16 %v125
    %v134 = vunpack.c.l.b16 %v126
    %v135 = vunpack.c.l.b16 %v127
    %v136 = vunpack.c.l.b16 %v128
    %v137 = vpack.c.b16 %v134, %v133
    %v138 = vpack.c.b16 %v136, %v135
    %v142 = vsel %vm38, %v124, 0
    %144 = vmatpush.bf16.msra.mxu0 0
    %145 = vmatpush.bf16.msra.mxu0 0
    %146 = vmatpush.bf16.msra.mxu0 0
    %147 = vmatpush.bf16.msra.mxu0 0
    %148 = vmatpush.bf16.msra.mxu0 0
    %149 = vmatpush.bf16.msra.mxu0 0
    %150 = vmatpush.bf16.msra.mxu0 %v138
    %151 = vmatpush.bf16.msra.mxu0 %v137
    %152 = vmatmul.bf16.gmra.mxu0 %v142
    %v153 = vpop.f32.mrf.mxu0
    %v154 = vadd.f32 0.0, %v153
    %v155 = vpop.f32.mrf.mxu0
    %156 = vdwg.mxu0
    %v157 = vmul.f32 %v154, 0.17677669
    %v158 = vpack.c.bf16 %v157, %v157
    %s159 = scalar_lea.vmem [#allocation2], 4
    %160 = vst.msk [vmem:[%s159] sm:$0xf] %vm57, %v158
    %v161 = vld [vmem:[%s3] sm:$0xf]
    %v162 = vld [vmem:[%s3 + $0x4] sm:$0xf]
    %v163 = vld [vmem:[%s3 + $0x8] sm:$0xf]
    %v164 = vld [vmem:[%s3 + $0xc] sm:$0xf]
    %s165 = scalar_lea.vmem %s1, 16
    %v166 = vld [vmem:[%s165] sm:$0xf]
    %v167 = vld [vmem:[%s165 + $0x4] sm:$0xf]
    %v168 = vld [vmem:[%s165 + $0x8] sm:$0xf]
    %v169 = vld [vmem:[%s165 + $0xc] sm:$0xf]
    %v174 = vunpack.c.l.b16 %v161
    %v175 = vunpack.c.l.b16 %v162
    %v176 = vunpack.c.l.b16 %v163
    %v177 = vunpack.c.l.b16 %v164
    %v178 = vpack.c.b16 %v175, %v174
    %v179 = vpack.c.b16 %v177, %v176
    %v184 = vunpack.c.l.b16 %v166
    %v185 = vunpack.c.l.b16 %v167
    %v186 = vunpack.c.l.b16 %v168
    %v187 = vunpack.c.l.b16 %v169
    %v188 = vpack.c.b16 %v185, %v184
    %v189 = vpack.c.b16 %v187, %v186
    %v193 = vsel %vm38, %v178, 0
    %v196 = vsel %vm38, %v179, 0
    %198 = vmatpush.bf16.msra.mxu0 0
    %199 = vmatpush.bf16.msra.mxu0 0
    %200 = vmatpush.bf16.msra.mxu0 0
    %201 = vmatpush.bf16.msra.mxu0 0
    %202 = vmatpush.bf16.msra.mxu0 0
    %203 = vmatpush.bf16.msra.mxu0 0
    %204 = vmatpush.bf16.msra.mxu0 %v189
    %205 = vmatpush.bf16.msra.mxu0 %v188
    %206 = vmatmul.bf16.gmra.mxu0 %v193
    %v207 = vpop.f32.mrf.mxu0
    %v208 = vadd.f32 0.0, %v207
    %v209 = vpop.f32.mrf.mxu0
    %v210 = vadd.f32 0.0, %v209
    %211 = vmatmul.bf16.gmra.mxu0 %v196
    %v212 = vpop.f32.mrf.mxu0
    %v213 = vadd.f32 0.0, %v212
    %v214 = vpop.f32.mrf.mxu0
    %v215 = vadd.f32 0.0, %v214
    %216 = vdwg.mxu0
    %v217 = vpack.c.bf16 %v208, %v208
    %v218 = vpack.c.bf16 %v210, %v210
    %v219 = vpack.c.bf16 %v213, %v213
    %v220 = vpack.c.bf16 %v215, %v215
    %s221 = scalar_lea.vmem %s5, 16
    %222 = vst.msk [vmem:[%s221] sm:$0xf] %vm118, %v217
    %223 = vst.msk [vmem:[%s221 + $0x4] sm:$0xf] %vm118, %v218
    %224 = vst.msk [vmem:[%s221 + $0x8] sm:$0xf] %vm118, %v219
    %225 = vst.msk [vmem:[%s221 + $0xc] sm:$0xf] %vm118, %v220
    // Predicated region
    $region18: #{tpu_custom_call.1} parent=1 // pred_check
      _
    $region19: #{tpu_custom_call.1} parent=1 // pred_check_branch
      %227 = sbr.rel (0) target = $region21
    $region20: #{tpu_custom_call.1} parent=1 // pred_region
      %229 = vsyncadd [#allocation3], 0
      %s230 = sshll.u32 [#allocation2], 4
      %s231 = int_to_ptr.vmem [resolvable:$true] %s230
      %s232 = sshll.u32 %s4, 4
      %s233 = int_to_ptr.hbm [resolvable:$true] %s232
      %238 = dma.vmem_to_hbm [thread:$0]  %s231, 128, %s233, [#allocation3], 64, 64, 4
    $region21: #{tpu_custom_call.1} parent=1 // pred_fallthru
      _
    // Predicated region
    $region22: #{tpu_custom_call.1} parent=1 // pred_check
      _
    $region23: #{tpu_custom_call.1} parent=1 // pred_check_branch
      %240 = sbr.rel (0) target = $region25
    $region24: #{tpu_custom_call.1} parent=1 // pred_region
      _
    $region25: #{tpu_custom_call.1} parent=1 // pred_fallthru
      _
    // Predicated region
    $region26: #{tpu_custom_call.1} parent=1 // pred_check
      _
    $region27: #{tpu_custom_call.1} parent=1 // pred_check_branch
      %242 = sbr.rel (0) target = $region29
    $region28: #{tpu_custom_call.1} parent=1 // pred_region
      %244 = dma.done [#allocation3], 128
    $region29: #{tpu_custom_call.1} parent=1 // pred_fallthru
      _
    // Predicated region
    $region30: #{tpu_custom_call.1} parent=1 // pred_check
      _
    $region31: #{tpu_custom_call.1} parent=1 // pred_check_branch
      %246 = sbr.rel (0) target = $region33
    $region32: #{tpu_custom_call.1} parent=1 // pred_region
      _
    $region33: #{tpu_custom_call.1} parent=1 // pred_fallthru
      _
    %247 = vsyncpa [#allocation3], 1

</llo_original>
